<compile_context>
chip_gen: v7x
topology: tpu7x:2x2x1
jax: 0.10.0
libtpu: 0.0.40
codegen_flags: <defaults>
</compile_context>

<pallas_src>
import functools
import math

import jax
import jax.numpy as jnp
from jax.experimental import pallas as pl
from jax.experimental.pallas import tpu as pltpu

LANE = 128    # hidden/output feature dims padded to multiples of this
SUBLANE = 8   # batch (second-to-last) dim alignment


def _round_up(x, m):
    return (x + m - 1) // m * m


def _resident_spec(shape):
    """BlockSpec for a grid-invariant operand: constant index_map so it stays
    VMEM-resident across batch tiles, single-buffered (Buffered(1)) because it
    is never re-fetched (halves resident-weight VMEM vs default double-buffering)."""
    index_map = lambda i: (0,) * len(shape)
    try:
        return pl.BlockSpec(shape, index_map, pipeline_mode=pl.Buffered(1))
    except TypeError:  # older BlockSpec API without pipeline_mode -> default buffering
        return pl.BlockSpec(shape, index_map)


def _pick_batch_tile(batch, tb_request, min_tiles=2):
    """Pick the batch tile: as large as requested (amortizes ~0.35us per-grid-step
    overhead and MXU fill/drain), capped to the 8-aligned batch, and split into at
    least `min_tiles` tiles when the batch allows so both v7x TensorCores get work."""
    b_aligned = _round_up(batch, SUBLANE)
    tb = min(_round_up(max(tb_request, SUBLANE), SUBLANE), b_aligned)
    if b_aligned > SUBLANE:
        per_core = _round_up(pl.cdiv(b_aligned, min_tiles), SUBLANE)
        tb = min(tb, max(per_core, SUBLANE))
    b_pad = _round_up(b_aligned, tb)
    return tb, b_pad


def _default_vmem_limit():
    """Scoped-VMEM limit: 7/8 of physical capacity (~112 MiB on v5e/v6e's 128 MiB,
    ~56 MiB on v7x's 64 MiB), well above the conservative 16/32 MiB defaults."""
    cap = 64 * 1024 * 1024  # conservative fallback = smallest physical VMEM (v7x)
    try:
        cap = int(pltpu.get_tpu_info().vmem_capacity_bytes)
    except Exception:
        pass
    return cap * 7 // 8


def _make_fused_mlp_kernel(num_layers, sigmoid_i):
    """One batch tile through the whole Linear(+ReLU/Sigmoid) stack.
    Matmuls run bf16 x bf16 -> f32 on the MXU; bias-add / ReLU / sigmoid run in
    f32 (safe on v5e, which has no bf16 VPU/EUP); the bf16 downcast feeding the
    next layer is fused into the activation epilogue."""

    def kernel(*refs):
        # refs = (x_ref, w0, b0, w1, b1, ..., o_ref)
        x_ref, o_ref = refs[0], refs[-1]
        h = x_ref[...].astype(jnp.bfloat16)  # one-time cast of the streamed input
        for l in range(num_layers):
            w_ref = refs[1 + 2 * l]  # (Din, Dout_p) bf16, VMEM-resident
            b_ref = refs[2 + 2 * l]  # (1,   Dout_p) f32,  VMEM-resident
            y = jnp.dot(h, w_ref[...], preferred_element_type=jnp.float32)
            y = y + b_ref[...]  # f32 epilogue, broadcast over the batch tile
            a = jax.nn.sigmoid(y) if l == sigmoid_i else jnp.maximum(y, 0.0)
            h = a.astype(jnp.bfloat16) if l < num_layers - 1 else a
        o_ref[...] = h.astype(o_ref.dtype)

    return kernel


def init_dlrm_mlp_params(key, widths):
    """torch.nn.Linear-style init: weight, bias ~ U(-1/sqrt(fan_in), 1/sqrt(fan_in)).
    Weights stored [fan_in, fan_out] (transpose of torch's [out, in])."""
    params = []
    for i in range(len(widths) - 1):
        fan_in, fan_out = widths[i], widths[i + 1]
        key, kw, kb = jax.random.split(key, 3)
        bound = 1.0 / math.sqrt(fan_in)
        w = jax.random.uniform(
            kw, (fan_in, fan_out), jnp.float32, minval=-bound, maxval=bound
        )
        b = jax.random.uniform(
            kb, (fan_out,), jnp.float32, minval=-bound, maxval=bound
        )
        params.append((w, b))
    return params


def pad_and_cast_params(params):
    """Prepare params for the fused kernel:
      * layer 0 keeps its TRUE fan_in (x is not feature-padded -> 4x smaller DMA),
      * every fan_out (and each subsequent fan_in) is zero-padded to a multiple of
        128 so intermediates/stores are lane-dense and unmasked,
      * weights are cast to bf16 once (MXU operands); biases stay f32.
    Zero padding is numerically exact: padded lanes feed zero weight rows downstream."""
    padded = []
    din_p = params[0][0].shape[0]  # first layer: unpadded K
    for w, b in params:
        din, dout = w.shape
        dout_p = _round_up(dout, LANE)
        w_p = jnp.zeros((din_p, dout_p), jnp.float32).at[:din, :dout].set(w)
        b_p = jnp.zeros((1, dout_p), jnp.float32).at[0, :dout].set(b)
        padded.append((w_p.astype(jnp.bfloat16), b_p))
        din_p = dout_p  # next layer's (padded) K
    return padded


def dlrm_mlp_forward(
    x,
    padded_params,
    out_width,
    sigmoid_i=None,
    tb=512,
    out_dtype=jnp.bfloat16,
    vmem_limit_bytes=None,
):
    """Fused DLRM MLP forward: one pallas_call for the whole stack."""
    B, d_in = x.shape
    num_layers = len(padded_params)
    assert padded_params[0][0].shape[0] == d_in, "first-layer fan_in mismatch"
    d_last_pad = padded_params[-1][0].shape[1]

    tb_eff, b_pad = _pick_batch_tile(B, tb)
    x_in = x if b_pad == B else jnp.zeros((b_pad, d_in), x.dtype).at[:B].set(x)
    grid = (b_pad // tb_eff,)

    # Streamed input: feature dim left at its true width (equals full array dim,
    # so the (8,128) block rule is satisfied).
    in_specs = [pl.BlockSpec((tb_eff, d_in), lambda i: (i, 0))]
    flat_inputs = [x_in]
    for w, b in padded_params:
        in_specs.append(_resident_spec(w.shape))
        in_specs.append(_resident_spec(b.shape))
        flat_inputs.extend([w, b])
    out_specs = pl.BlockSpec((tb_eff, d_last_pad), lambda i: (i, 0))

    if vmem_limit_bytes is None:
        vmem_limit_bytes = _default_vmem_limit()

    flops = 2 * b_pad * sum(w.shape[0] * w.shape[1] for w, _ in padded_params)
    transcendentals = 0
    if sigmoid_i is not None and 0 <= sigmoid_i < num_layers:
        transcendentals = b_pad * padded_params[sigmoid_i][0].shape[1]
    bytes_accessed = (
        x_in.size * x_in.dtype.itemsize
        + sum(
            w.size * w.dtype.itemsize + b.size * b.dtype.itemsize
            for w, b in padded_params
        )
        + b_pad * d_last_pad * jnp.dtype(out_dtype).itemsize
    )

    out = pl.pallas_call(
        _make_fused_mlp_kernel(num_layers, sigmoid_i),
        out_shape=jax.ShapeDtypeStruct((b_pad, d_last_pad), out_dtype),
        grid=grid,
        in_specs=in_specs,
        out_specs=out_specs,
        compiler_params=pltpu.CompilerParams(
            dimension_semantics=("parallel",),  # batch tiles shard across TCs (v7x)
            vmem_limit_bytes=int(vmem_limit_bytes),
        ),
        cost_estimate=pl.CostEstimate(
            flops=int(flops),
            transcendentals=int(transcendentals),
            bytes_accessed=int(bytes_accessed),
        ),
    )(*flat_inputs)

    # Strip batch / lane padding (width-1 logit lives in lane 0 of the slab).
    return out[:B, :out_width]


def ref_dlrm_mlp(x, params, sigmoid_i=None):
    """Pure-JAX f32 reference (matches torch semantics)."""
    for i, (w, b) in enumerate(params):
        y = x @ w + b
        x = jax.nn.sigmoid(y) if i == sigmoid_i else jnp.maximum(y, 0.0)
    return x


if __name__ == "__main__":
    # Small DLRM-like top-MLP: 32 features in, 1 logit out, sigmoid on final layer.
    widths = [32, 64, 16, 1]
    sigmoid_i = len(widths) - 2

    key = jax.random.PRNGKey(0)
    key, kp = jax.random.split(key)
    params = init_dlrm_mlp_params(kp, widths)
    padded_params = pad_and_cast_params(params)

    fwd = jax.jit(
        functools.partial(dlrm_mlp_forward, out_width=widths[-1], sigmoid_i=sigmoid_i)
    )

    def check(batch, seed):
        x = jax.random.normal(
            jax.random.PRNGKey(seed), (batch, widths[0]), dtype=jnp.float32
        )
        out = fwd(x, padded_params)
        jax.block_until_ready(out)
        assert out.shape == (batch, widths[-1]), out.shape
        out_f32 = out.astype(jnp.float32)
        # Sigmoid output must land in [0, 1].
        assert bool(jnp.all((out_f32 >= 0.0) & (out_f32 <= 1.0)))
        # Numerical check vs pure-JAX f32 reference (bf16 matmul, f32 accumulate,
        # bf16 output writeback).
        ref = ref_dlrm_mlp(x, params, sigmoid_i)
        max_err = float(jnp.max(jnp.abs(out_f32 - ref)))
        assert bool(jnp.allclose(out_f32, ref, atol=2e-2, rtol=2e-2)), max_err

    check(8, 1)    # single batch tile
    check(256, 2)  # 2 batch tiles -> grid=(2,), exercises megacore sharding path
    check(250, 3)  # ragged batch -> batch padding + slice-off of padded rows

    print("KERNEL_OK")
</pallas_src>

<mosaic_0001>
module attributes {stable_mosaic.version = 11 : i64} {
  func.func @kernel(%arg0: i32, %arg1: memref<8x32xf32, #tpu.memory_space<vmem>>, %arg2: memref<32x128xbf16, #tpu.memory_space<vmem>>, %arg3: memref<1x128xf32, #tpu.memory_space<vmem>>, %arg4: memref<128x128xbf16, #tpu.memory_space<vmem>>, %arg5: memref<1x128xf32, #tpu.memory_space<vmem>>, %arg6: memref<128x128xbf16, #tpu.memory_space<vmem>>, %arg7: memref<1x128xf32, #tpu.memory_space<vmem>>, %arg8: memref<8x128xbf16, #tpu.memory_space<vmem>>) attributes {dimension_semantics = [#tpu.dimension_semantics<parallel>], iteration_bounds = array<i64: 1>, scalar_prefetch = 0 : i64, scratch_operands = 0 : i64, tpu.core_type = #tpu.core_type<tc>, window_params = [{transform_indices = @transform_0, window_bounds = array<i64: 8, 32>}, {pipeline_mode = #tpu.pipeline_mode<synchronous>, transform_indices = @transform_1, window_bounds = array<i64: 32, 128>}, {pipeline_mode = #tpu.pipeline_mode<synchronous>, transform_indices = @transform_2, window_bounds = array<i64: 1, 128>}, {pipeline_mode = #tpu.pipeline_mode<synchronous>, transform_indices = @transform_3, window_bounds = array<i64: 128, 128>}, {pipeline_mode = #tpu.pipeline_mode<synchronous>, transform_indices = @transform_4, window_bounds = array<i64: 1, 128>}, {pipeline_mode = #tpu.pipeline_mode<synchronous>, transform_indices = @transform_5, window_bounds = array<i64: 128, 128>}, {pipeline_mode = #tpu.pipeline_mode<synchronous>, transform_indices = @transform_6, window_bounds = array<i64: 1, 128>}, {transform_indices = @transform_7, window_bounds = array<i64: 8, 128>}]} {
    %c0 = arith.constant 0 : index
    %c0_0 = arith.constant 0 : index
    %0 = vector.load %arg1[%c0, %c0_0] : memref<8x32xf32, #tpu.memory_space<vmem>>, vector<8x32xf32>
    %1 = arith.truncf %0 : vector<8x32xf32> to vector<8x32xbf16>
    %c0_1 = arith.constant 0 : index
    %c0_2 = arith.constant 0 : index
    %2 = vector.load %arg2[%c0_1, %c0_2] : memref<32x128xbf16, #tpu.memory_space<vmem>>, vector<32x128xbf16>
    %cst = arith.constant dense<0.000000e+00> : vector<8x128xf32>
    %3 = tpu.matmul %1, %2, %cst {dimension_numbers = #tpu.dot_dimension_numbers<[1], [0], [0], [1], [0, 0, 1, 1], [], []>} : vector<8x32xbf16>, vector<32x128xbf16>, vector<8x128xf32> -> vector<8x128xf32>
    %c0_3 = arith.constant 0 : index
    %c0_4 = arith.constant 0 : index
    %4 = vector.load %arg3[%c0_3, %c0_4] : memref<1x128xf32, #tpu.memory_space<vmem>>, vector<1x128xf32>
    %5 = vector.broadcast %4 : vector<1x128xf32> to vector<8x128xf32>
    %6 = arith.addf %3, %5 : vector<8x128xf32>
    %cst_5 = arith.constant 0.000000e+00 : f32
    %7 = vector.broadcast %cst_5 : f32 to vector<8x128xf32>
    %8 = arith.maximumf %6, %7 : vector<8x128xf32>
    %9 = arith.truncf %8 : vector<8x128xf32> to vector<8x128xbf16>
    %c0_6 = arith.constant 0 : index
    %c0_7 = arith.constant 0 : index
    %10 = vector.load %arg4[%c0_6, %c0_7] : memref<128x128xbf16, #tpu.memory_space<vmem>>, vector<128x128xbf16>
    %cst_8 = arith.constant dense<0.000000e+00> : vector<8x128xf32>
    %11 = tpu.matmul %9, %10, %cst_8 {dimension_numbers = #tpu.dot_dimension_numbers<[1], [0], [0], [1], [0, 0, 1, 1], [], []>} : vector<8x128xbf16>, vector<128x128xbf16>, vector<8x128xf32> -> vector<8x128xf32>
    %c0_9 = arith.constant 0 : index
    %c0_10 = arith.constant 0 : index
    %12 = vector.load %arg5[%c0_9, %c0_10] : memref<1x128xf32, #tpu.memory_space<vmem>>, vector<1x128xf32>
    %13 = vector.broadcast %12 : vector<1x128xf32> to vector<8x128xf32>
    %14 = arith.addf %11, %13 : vector<8x128xf32>
    %cst_11 = arith.constant 0.000000e+00 : f32
    %15 = vector.broadcast %cst_11 : f32 to vector<8x128xf32>
    %16 = arith.maximumf %14, %15 : vector<8x128xf32>
    %17 = arith.truncf %16 : vector<8x128xf32> to vector<8x128xbf16>
    %c0_12 = arith.constant 0 : index
    %c0_13 = arith.constant 0 : index
    %18 = vector.load %arg6[%c0_12, %c0_13] : memref<128x128xbf16, #tpu.memory_space<vmem>>, vector<128x128xbf16>
    %cst_14 = arith.constant dense<0.000000e+00> : vector<8x128xf32>
    %19 = tpu.matmul %17, %18, %cst_14 {dimension_numbers = #tpu.dot_dimension_numbers<[1], [0], [0], [1], [0, 0, 1, 1], [], []>} : vector<8x128xbf16>, vector<128x128xbf16>, vector<8x128xf32> -> vector<8x128xf32>
    %c0_15 = arith.constant 0 : index
    %c0_16 = arith.constant 0 : index
    %20 = vector.load %arg7[%c0_15, %c0_16] : memref<1x128xf32, #tpu.memory_space<vmem>>, vector<1x128xf32>
    %21 = vector.broadcast %20 : vector<1x128xf32> to vector<8x128xf32>
    %22 = arith.addf %19, %21 : vector<8x128xf32>
    %23 = arith.negf %22 : vector<8x128xf32>
    %24 = math.exp %23 : vector<8x128xf32>
    %cst_17 = arith.constant 1.000000e+00 : f32
    %25 = vector.broadcast %cst_17 : f32 to vector<8x128xf32>
    %26 = arith.addf %25, %24 : vector<8x128xf32>
    %27 = arith.divf %25, %26 : vector<8x128xf32>
    %28 = arith.truncf %27 : vector<8x128xf32> to vector<8x128xbf16>
    %c0_18 = arith.constant 0 : index
    %c0_19 = arith.constant 0 : index
    %29 = vector.load %arg8[%c0_18, %c0_19] : memref<8x128xbf16, #tpu.memory_space<vmem>>, vector<8x128xbf16>
    tpu.vector_store %arg8[%c0_18, %c0_19], %28 {strides = array<i32>} : memref<8x128xbf16, #tpu.memory_space<vmem>>, vector<8x128xbf16>,
    return
  }
  func.func @transform_0(%arg0: i32) -> (i32, i32) {
    %c0_i32 = arith.constant 0 : i32
    %c0_i32_0 = arith.constant 0 : i32
    return %arg0, %c0_i32 : i32, i32
  }
  func.func @transform_1(%arg0: i32) -> (i32, i32) {
    %c0_i32 = arith.constant 0 : i32
    %c0_i32_0 = arith.constant 0 : i32
    %c0_i32_1 = arith.constant 0 : i32
    return %c0_i32, %c0_i32_0 : i32, i32
  }
  func.func @transform_2(%arg0: i32) -> (i32, i32) {
    %c0_i32 = arith.constant 0 : i32
    %c0_i32_0 = arith.constant 0 : i32
    %c0_i32_1 = arith.constant 0 : i32
    return %c0_i32, %c0_i32_0 : i32, i32
  }
  func.func @transform_3(%arg0: i32) -> (i32, i32) {
    %c0_i32 = arith.constant 0 : i32
    %c0_i32_0 = arith.constant 0 : i32
    %c0_i32_1 = arith.constant 0 : i32
    return %c0_i32, %c0_i32_0 : i32, i32
  }
  func.func @transform_4(%arg0: i32) -> (i32, i32) {
    %c0_i32 = arith.constant 0 : i32
    %c0_i32_0 = arith.constant 0 : i32
    %c0_i32_1 = arith.constant 0 : i32
    return %c0_i32, %c0_i32_0 : i32, i32
  }
  func.func @transform_5(%arg0: i32) -> (i32, i32) {
    %c0_i32 = arith.constant 0 : i32
    %c0_i32_0 = arith.constant 0 : i32
    %c0_i32_1 = arith.constant 0 : i32
    return %c0_i32, %c0_i32_0 : i32, i32
  }
  func.func @transform_6(%arg0: i32) -> (i32, i32) {
    %c0_i32 = arith.constant 0 : i32
    %c0_i32_0 = arith.constant 0 : i32
    %c0_i32_1 = arith.constant 0 : i32
    return %c0_i32, %c0_i32_0 : i32, i32
  }
  func.func @transform_7(%arg0: i32) -> (i32, i32) {
    %c0_i32 = arith.constant 0 : i32
    %c0_i32_0 = arith.constant 0 : i32
    return %arg0, %c0_i32 : i32, i32
  }
}

</mosaic_0001>

<llo_original>
// kernel: dlrm_mlp_forward.1
$region0: #{dlrm_mlp_forward.1}
  #allocation0 [shape = 'u32[]', space=smem, size = 0x4, offset = 0x4, fixed_abs, tag = 'smem constant byte address 0x4 - core index']
  #allocation1 [shape = 'u32[144,128]{1,0:T(1,128)}', space=vmem, size = 0x12000, scoped, tag = 'internal scratch']
  %s0 = inlined_call_operand.hbm [shape: f32[8,32], index: 0, kind: input, shape index: {}]
  %s1 = inlined_call_operand.hbm [shape: bf16[32,128], index: 1, kind: input, shape index: {}]
  %s2 = inlined_call_operand.vmem [shape: f32[1,128], index: 2, kind: input, shape index: {}]
  %s3 = inlined_call_operand.hbm [shape: bf16[128,128], index: 3, kind: input, shape index: {}]
  %s4 = inlined_call_operand.vmem [shape: f32[1,128], index: 4, kind: input, shape index: {}]
  %s5 = inlined_call_operand.hbm [shape: bf16[128,128], index: 5, kind: input, shape index: {}]
  %s6 = inlined_call_operand.vmem [shape: f32[1,128], index: 6, kind: input, shape index: {}]
  %s7 = inlined_call_operand.vmem [shape: bf16[8,128], index: 7, kind: output, shape index: {}]
  %s8 = sld [smem:[#allocation0]]
  $region54: #{dlrm_mlp_forward.1} parent=0
    _
  %s10 = ssub.s32 1, %s8
  %s11 = scalar_select 0, %s10, %s8
  $region1: #{dlrm_mlp_forward.1} parent=0
    #allocation2 [shape = 'u8[4096]{0}', space=vmem, size = 0x1000, scoped, tag = 'input window, operand 0, single buffered']
    #allocation3 [shape = 's32[1]{0}', space=sflag, size = 0x4, scoped, tag = 'scoped memory for dlrm_mlp_forward.1']
    #allocation4 [shape = 'u8[8192]{0}', space=vmem, size = 0x2000, scoped, tag = 'input window, operand 1, single buffered']
    #allocation5 [shape = 's32[1]{0}', space=sflag, size = 0x4, scoped, tag = 'scoped memory for dlrm_mlp_forward.1']
    #allocation6 [shape = 'u8[32768]{0}', space=vmem, size = 0x8000, scoped, tag = 'input window, operand 3, single buffered']
    #allocation7 [shape = 'u8[32768]{0}', space=vmem, size = 0x8000, scoped, tag = 'input window, operand 5, single buffered']
    #allocation8 [shape = 's32[1]{0}', space=sflag, size = 0x4, scoped, tag = 'scoped memory for dlrm_mlp_forward.1']
    %12 = vsyncpa [#allocation3], 0
    %13 = vsyncpa [#allocation5], 0
    %14 = vsyncpa [#allocation8], 0
    // Predicated region
    $region2: #{dlrm_mlp_forward.1} parent=1 // pred_check
      _
    $region3: #{dlrm_mlp_forward.1} parent=1 // pred_check_branch
      %16 = sbr.rel (0) target = $region5
    $region4: #{dlrm_mlp_forward.1} parent=1 // pred_region
      %s18 = ssub.s32 128, 128
      %19 = vsyncadd [#allocation3], %s18
      %s21 = sshll.u32 [#allocation2], 4
      %s22 = int_to_ptr.vmem [resolvable:$true] %s21
      %24 = dma.hbm_to_vmem [thread:$0]  %s0, 128, %s22, [#allocation3]
    $region5: #{dlrm_mlp_forward.1} parent=1 // pred_fallthru
      _
    // Predicated region
    $region6: #{dlrm_mlp_forward.1} parent=1 // pred_check
      _
    $region7: #{dlrm_mlp_forward.1} parent=1 // pred_check_branch
      %26 = sbr.rel (0) target = $region9
    $region8: #{dlrm_mlp_forward.1} parent=1 // pred_region
      %s28 = ssub.s32 256, 256
      %29 = vsyncadd [#allocation5], %s28
      %s30 = sshll.u32 [#allocation4], 4
      %s31 = int_to_ptr.vmem [resolvable:$true] %s30
      %36 = dma.hbm_to_vmem [thread:$0]  %s1, 256, %s31, [#allocation5], 64, 64, 4
    $region9: #{dlrm_mlp_forward.1} parent=1 // pred_fallthru
      _
    // Predicated region
    $region10: #{dlrm_mlp_forward.1} parent=1 // pred_check
      _
    $region11: #{dlrm_mlp_forward.1} parent=1 // pred_check_branch
      %38 = sbr.rel (0) target = $region13
    $region12: #{dlrm_mlp_forward.1} parent=1 // pred_region
      _
    $region13: #{dlrm_mlp_forward.1} parent=1 // pred_fallthru
      _
    // Predicated region
    $region14: #{dlrm_mlp_forward.1} parent=1 // pred_check
      _
    $region15: #{dlrm_mlp_forward.1} parent=1 // pred_check_branch
      %40 = sbr.rel (0) target = $region17
    $region16: #{dlrm_mlp_forward.1} parent=1 // pred_region
      %s42 = ssub.s32 1024, 1024
      %43 = vsyncadd [#allocation5], %s42
      %s44 = sshll.u32 [#allocation6], 4
      %s45 = int_to_ptr.vmem [resolvable:$true] %s44
      %50 = dma.hbm_to_vmem [thread:$0]  %s3, 1024, %s45, [#allocation5], 64, 64, 4
    $region17: #{dlrm_mlp_forward.1} parent=1 // pred_fallthru
      _
    // Predicated region
    $region18: #{dlrm_mlp_forward.1} parent=1 // pred_check
      _
    $region19: #{dlrm_mlp_forward.1} parent=1 // pred_check_branch
      %52 = sbr.rel (0) target = $region21
    $region20: #{dlrm_mlp_forward.1} parent=1 // pred_region
      _
    $region21: #{dlrm_mlp_forward.1} parent=1 // pred_fallthru
      _
    // Predicated region
    $region22: #{dlrm_mlp_forward.1} parent=1 // pred_check
      _
    $region23: #{dlrm_mlp_forward.1} parent=1 // pred_check_branch
      %54 = sbr.rel (0) target = $region25
    $region24: #{dlrm_mlp_forward.1} parent=1 // pred_region
      %s56 = ssub.s32 1024, 1024
      %57 = vsyncadd [#allocation8], %s56
      %s58 = sshll.u32 [#allocation7], 4
      %s59 = int_to_ptr.vmem [resolvable:$true] %s58
      %64 = dma.hbm_to_vmem [thread:$0]  %s5, 1024, %s59, [#allocation8], 64, 64, 4
    $region25: #{dlrm_mlp_forward.1} parent=1 // pred_fallthru
      _
    // Predicated region
    $region26: #{dlrm_mlp_forward.1} parent=1 // pred_check
      _
    $region27: #{dlrm_mlp_forward.1} parent=1 // pred_check_branch
      %66 = sbr.rel (0) target = $region29
    $region28: #{dlrm_mlp_forward.1} parent=1 // pred_region
      _
    $region29: #{dlrm_mlp_forward.1} parent=1 // pred_fallthru
      _
    // Predicated region
    $region30: #{dlrm_mlp_forward.1} parent=1 // pred_check
      _
    $region31: #{dlrm_mlp_forward.1} parent=1 // pred_check_branch
      %68 = sbr.rel (0) target = $region33
    $region32: #{dlrm_mlp_forward.1} parent=1 // pred_region
      %69 = dma.done [#allocation3], 128
    $region33: #{dlrm_mlp_forward.1} parent=1 // pred_fallthru
      _
    // Predicated region
    $region34: #{dlrm_mlp_forward.1} parent=1 // pred_check
      _
    $region35: #{dlrm_mlp_forward.1} parent=1 // pred_check_branch
      %71 = sbr.rel (0) target = $region37
    $region36: #{dlrm_mlp_forward.1} parent=1 // pred_region
      %72 = dma.done [#allocation5], 256
    $region37: #{dlrm_mlp_forward.1} parent=1 // pred_fallthru
      _
    // Predicated region
    $region38: #{dlrm_mlp_forward.1} parent=1 // pred_check
      _
    $region39: #{dlrm_mlp_forward.1} parent=1 // pred_check_branch
      %74 = sbr.rel (0) target = $region41
    $region40: #{dlrm_mlp_forward.1} parent=1 // pred_region
      %75 = dma.done [#allocation5], 1024
    $region41: #{dlrm_mlp_forward.1} parent=1 // pred_fallthru
      _
    // Predicated region
    $region42: #{dlrm_mlp_forward.1} parent=1 // pred_check
      _
    $region43: #{dlrm_mlp_forward.1} parent=1 // pred_check_branch
      %77 = sbr.rel (0) target = $region45
    $region44: #{dlrm_mlp_forward.1} parent=1 // pred_region
      %78 = dma.done [#allocation8], 1024
    $region45: #{dlrm_mlp_forward.1} parent=1 // pred_fallthru
      _
    %v80 = vld [vmem:[#allocation2] sm:$0xff]
    %v81 = vpack.c.bf16 %v80, %v80
    %v82 = vld [vmem:[#allocation4] sm:$0xf]
    %v83 = vld [vmem:[#allocation4 + $0x4] sm:$0xf]
    %v84 = vld [vmem:[#allocation4 + $0x8] sm:$0xf]
    %v85 = vld [vmem:[#allocation4 + $0xc] sm:$0xf]
    %v86 = vld [vmem:[%s2] sm:$0x1]
    %v88 = vlaneseq
    %v89 = vshrl.u32 %v88, 7
    %v90 = vsub.s32 0, %v89
    %v91 = vrot.slane %v86, %v90
    %v97 = vunpack.c.l.b16 %v82
    %v98 = vunpack.c.l.b16 %v83
    %v99 = vunpack.c.l.b16 %v84
    %v100 = vunpack.c.l.b16 %v85
    %v101 = vpack.c.b16 %v98, %v97
    %v102 = vpack.c.b16 %v100, %v99
    %vm105 = vcmask 261120
    %v107 = vsel %vm105, %v81, 0
    %109 = vmatprep.subr.bf16.mxu0 0
    %110 = vmatpush1.bf16.msra.mxu0 %v101
    %111 = vmatprep.subr.bf16.mxu0 0
    %112 = vmatpush1.bf16.msra.mxu0 %v102
    %113 = vmatprep.subr.bf16.mxu0 0
    %114 = vmatpush1.bf16.msra.mxu0 0
    %115 = vmatprep.subr.bf16.mxu0 0
    %116 = vmatpush1.bf16.msra.mxu0 0
    %117 = vmatprep.subr.bf16.mxu0 0
    %118 = vmatpush1.bf16.msra.mxu0 0
    %119 = vmatprep.subr.bf16.mxu0 0
    %120 = vmatpush1.bf16.msra.mxu0 0
    %121 = vmatprep.subr.bf16.mxu0 0
    %122 = vmatpush1.bf16.msra.mxu0 0
    %123 = vmatprep.subr.bf16.mxu0 0
    %124 = vmatpush1.bf16.msra.mxu0 0
    %125 = vmatprep.subr.bf16.mxu0 0
    %126 = vmatpush1.bf16.msra.mxu0 0
    %127 = vmatprep.subr.bf16.mxu0 0
    %128 = vmatpush1.bf16.msra.mxu0 0
    %129 = vmatprep.subr.bf16.mxu0 0
    %130 = vmatpush1.bf16.msra.mxu0 0
    %131 = vmatprep.subr.bf16.mxu0 0
    %132 = vmatpush1.bf16.msra.mxu0 0
    %133 = vmatprep.subr.bf16.mxu0 0
    %134 = vmatpush1.bf16.msra.mxu0 0
    %135 = vmatprep.subr.bf16.mxu0 0
    %136 = vmatpush1.bf16.msra.mxu0 0
    %137 = vmatprep.subr.bf16.mxu0 0
    %138 = vmatpush1.bf16.msra.mxu0 0
    %139 = vmatprep.subr.bf16.mxu0 0
    %140 = vmatpush1.bf16.msra.mxu0 0
    %141 = vmatprep.mubr.bf16.mxu0 0
    %142 = vmatmul.mubr.bf16.gmra.mrb[0].mxu0 %v107
    %v143 = vpop.f32.mrb[0].mxu0
    %v144 = vadd.f32 %v91, %v143
    %v145 = vpop.f32.mrb[0].mxu0
    %v146 = vpop.f32.mrb[0].mxu0
    %v147 = vpop.f32.mrb[0].mxu0
    %148 = vdwg.mxu0
    %v149 = vmax.f32 %v144, 0.0
    %v150 = vpack.c.bf16 %v149, %v149
    %v151 = vld [vmem:[#allocation6] sm:$0xf]
    %v152 = vld [vmem:[#allocation6 + $0x4] sm:$0xf]
    %v153 = vld [vmem:[#allocation6 + $0x8] sm:$0xf]
    %v154 = vld [vmem:[#allocation6 + $0xc] sm:$0xf]
    %v155 = vld [vmem:[#allocation6 + $0x10] sm:$0xf]
    %v156 = vld [vmem:[#allocation6 + $0x14] sm:$0xf]
    %v157 = vld [vmem:[#allocation6 + $0x18] sm:$0xf]
    %v158 = vld [vmem:[#allocation6 + $0x1c] sm:$0xf]
    %v159 = vld [vmem:[#allocation6 + $0x20] sm:$0xf]
    %v160 = vld [vmem:[#allocation6 + $0x24] sm:$0xf]
    %v161 = vld [vmem:[#allocation6 + $0x28] sm:$0xf]
    %v162 = vld [vmem:[#allocation6 + $0x2c] sm:$0xf]
    %v163 = vld [vmem:[#allocation6 + $0x30] sm:$0xf]
    %v164 = vld [vmem:[#allocation6 + $0x34] sm:$0xf]
    %v165 = vld [vmem:[#allocation6 + $0x38] sm:$0xf]
    %v166 = vld [vmem:[#allocation6 + $0x3c] sm:$0xf]
    %v167 = vld [vmem:[%s4] sm:$0x1]
    %v169 = vlaneseq
    %v170 = vshrl.u32 %v169, 7
    %v171 = vsub.s32 0, %v170
    %v172 = vrot.slane %v167, %v171
    %v190 = vunpack.c.l.b16 %v151
    %v191 = vunpack.c.l.b16 %v152
    %v192 = vunpack.c.l.b16 %v153
    %v193 = vunpack.c.l.b16 %v154
    %v194 = vunpack.c.l.b16 %v155
    %v195 = vunpack.c.l.b16 %v156
    %v196 = vunpack.c.l.b16 %v157
    %v197 = vunpack.c.l.b16 %v158
    %v198 = vunpack.c.l.b16 %v159
    %v199 = vunpack.c.l.b16 %v160
    %v200 = vunpack.c.l.b16 %v161
    %v201 = vunpack.c.l.b16 %v162
    %v202 = vunpack.c.l.b16 %v163
    %v203 = vunpack.c.l.b16 %v164
    %v204 = vunpack.c.l.b16 %v165
    %v205 = vunpack.c.l.b16 %v166
    %v206 = vpack.c.b16 %v191, %v190
    %v207 = vpack.c.b16 %v193, %v192
    %v208 = vpack.c.b16 %v195, %v194
    %v209 = vpack.c.b16 %v197, %v196
    %v210 = vpack.c.b16 %v199, %v198
    %v211 = vpack.c.b16 %v201, %v200
    %v212 = vpack.c.b16 %v203, %v202
    %v213 = vpack.c.b16 %v205, %v204
    %222 = vmatprep.subr.bf16.mxu0 0
    %223 = vmatpush1.bf16.msra.mxu0 %v206
    %224 = vmatprep.subr.bf16.mxu0 0
    %225 = vmatpush1.bf16.msra.mxu0 %v207
    %226 = vmatprep.subr.bf16.mxu0 0
    %227 = vmatpush1.bf16.msra.mxu0 %v208
    %228 = vmatprep.subr.bf16.mxu0 0
    %229 = vmatpush1.bf16.msra.mxu0 %v209
    %230 = vmatprep.subr.bf16.mxu0 0
    %231 = vmatpush1.bf16.msra.mxu0 %v210
    %232 = vmatprep.subr.bf16.mxu0 0
    %233 = vmatpush1.bf16.msra.mxu0 %v211
    %234 = vmatprep.subr.bf16.mxu0 0
    %235 = vmatpush1.bf16.msra.mxu0 %v212
    %236 = vmatprep.subr.bf16.mxu0 0
    %237 = vmatpush1.bf16.msra.mxu0 %v213
    %238 = vmatprep.subr.bf16.mxu0 0
    %239 = vmatpush1.bf16.msra.mxu0 0
    %240 = vmatprep.subr.bf16.mxu0 0
    %241 = vmatpush1.bf16.msra.mxu0 0
    %242 = vmatprep.subr.bf16.mxu0 0
    %243 = vmatpush1.bf16.msra.mxu0 0
    %244 = vmatprep.subr.bf16.mxu0 0
    %245 = vmatpush1.bf16.msra.mxu0 0
    %246 = vmatprep.subr.bf16.mxu0 0
    %247 = vmatpush1.bf16.msra.mxu0 0
    %248 = vmatprep.subr.bf16.mxu0 0
    %249 = vmatpush1.bf16.msra.mxu0 0
    %250 = vmatprep.subr.bf16.mxu0 0
    %251 = vmatpush1.bf16.msra.mxu0 0
    %252 = vmatprep.subr.bf16.mxu0 0
    %253 = vmatpush1.bf16.msra.mxu0 0
    %254 = vmatprep.mubr.bf16.mxu0 0
    %255 = vmatmul.mubr.bf16.gmra.mrb[0].mxu0 %v150
    %v256 = vpop.f32.mrb[0].mxu0
    %v257 = vadd.f32 %v172, %v256
    %v258 = vpop.f32.mrb[0].mxu0
    %v259 = vpop.f32.mrb[0].mxu0
    %v260 = vpop.f32.mrb[0].mxu0
    %261 = vdwg.mxu0
    %v262 = vmax.f32 %v257, 0.0
    %v263 = vpack.c.bf16 %v262, %v262
    %v264 = vld [vmem:[#allocation7] sm:$0xf]
    %v265 = vld [vmem:[#allocation7 + $0x4] sm:$0xf]
    %v266 = vld [vmem:[#allocation7 + $0x8] sm:$0xf]
    %v267 = vld [vmem:[#allocation7 + $0xc] sm:$0xf]
    %v268 = vld [vmem:[#allocation7 + $0x10] sm:$0xf]
    %v269 = vld [vmem:[#allocation7 + $0x14] sm:$0xf]
    %v270 = vld [vmem:[#allocation7 + $0x18] sm:$0xf]
    %v271 = vld [vmem:[#allocation7 + $0x1c] sm:$0xf]
    %v272 = vld [vmem:[#allocation7 + $0x20] sm:$0xf]
    %v273 = vld [vmem:[#allocation7 + $0x24] sm:$0xf]
    %v274 = vld [vmem:[#allocation7 + $0x28] sm:$0xf]
    %v275 = vld [vmem:[#allocation7 + $0x2c] sm:$0xf]
    %v276 = vld [vmem:[#allocation7 + $0x30] sm:$0xf]
    %v277 = vld [vmem:[#allocation7 + $0x34] sm:$0xf]
    %v278 = vld [vmem:[#allocation7 + $0x38] sm:$0xf]
    %v279 = vld [vmem:[#allocation7 + $0x3c] sm:$0xf]
    %v280 = vld [vmem:[%s6] sm:$0x1]
    %v282 = vlaneseq
    %v283 = vshrl.u32 %v282, 7
    %v284 = vsub.s32 0, %v283
    %v285 = vrot.slane %v280, %v284
    %v303 = vunpack.c.l.b16 %v264
    %v304 = vunpack.c.l.b16 %v265
    %v305 = vunpack.c.l.b16 %v266
    %v306 = vunpack.c.l.b16 %v267
    %v307 = vunpack.c.l.b16 %v268
    %v308 = vunpack.c.l.b16 %v269
    %v309 = vunpack.c.l.b16 %v270
    %v310 = vunpack.c.l.b16 %v271
    %v311 = vunpack.c.l.b16 %v272
    %v312 = vunpack.c.l.b16 %v273
    %v313 = vunpack.c.l.b16 %v274
    %v314 = vunpack.c.l.b16 %v275
    %v315 = vunpack.c.l.b16 %v276
    %v316 = vunpack.c.l.b16 %v277
    %v317 = vunpack.c.l.b16 %v278
    %v318 = vunpack.c.l.b16 %v279
    %v319 = vpack.c.b16 %v304, %v303
    %v320 = vpack.c.b16 %v306, %v305
    %v321 = vpack.c.b16 %v308, %v307
    %v322 = vpack.c.b16 %v310, %v309
    %v323 = vpack.c.b16 %v312, %v311
    %v324 = vpack.c.b16 %v314, %v313
    %v325 = vpack.c.b16 %v316, %v315
    %v326 = vpack.c.b16 %v318, %v317
    %335 = vmatprep.subr.bf16.mxu0 0
    %336 = vmatpush1.bf16.msra.mxu0 %v319
    %337 = vmatprep.subr.bf16.mxu0 0
    %338 = vmatpush1.bf16.msra.mxu0 %v320
    %339 = vmatprep.subr.bf16.mxu0 0
    %340 = vmatpush1.bf16.msra.mxu0 %v321
    %341 = vmatprep.subr.bf16.mxu0 0
    %342 = vmatpush1.bf16.msra.mxu0 %v322
    %343 = vmatprep.subr.bf16.mxu0 0
    %344 = vmatpush1.bf16.msra.mxu0 %v323
    %345 = vmatprep.subr.bf16.mxu0 0
    %346 = vmatpush1.bf16.msra.mxu0 %v324
    %347 = vmatprep.subr.bf16.mxu0 0
    %348 = vmatpush1.bf16.msra.mxu0 %v325
    %349 = vmatprep.subr.bf16.mxu0 0
    %350 = vmatpush1.bf16.msra.mxu0 %v326
    %351 = vmatprep.subr.bf16.mxu0 0
    %352 = vmatpush1.bf16.msra.mxu0 0
    %353 = vmatprep.subr.bf16.mxu0 0
    %354 = vmatpush1.bf16.msra.mxu0 0
    %355 = vmatprep.subr.bf16.mxu0 0
    %356 = vmatpush1.bf16.msra.mxu0 0
    %357 = vmatprep.subr.bf16.mxu0 0
    %358 = vmatpush1.bf16.msra.mxu0 0
    %359 = vmatprep.subr.bf16.mxu0 0
    %360 = vmatpush1.bf16.msra.mxu0 0
    %361 = vmatprep.subr.bf16.mxu0 0
    %362 = vmatpush1.bf16.msra.mxu0 0
    %363 = vmatprep.subr.bf16.mxu0 0
    %364 = vmatpush1.bf16.msra.mxu0 0
    %365 = vmatprep.subr.bf16.mxu0 0
    %366 = vmatpush1.bf16.msra.mxu0 0
    %367 = vmatprep.mubr.bf16.mxu0 0
    %368 = vmatmul.mubr.bf16.gmra.mrb[0].mxu0 %v263
    %v369 = vpop.f32.mrb[0].mxu0
    %v370 = vadd.f32 %v285, %v369
    %v371 = vpop.f32.mrb[0].mxu0
    %v372 = vpop.f32.mrb[0].mxu0
    %v373 = vpop.f32.mrb[0].mxu0
    %374 = vdwg.mxu0
    %v375 = vxor.u32 %v370, 2147483648
    %v376 = vmul.f32 %v375, 1.442695
    %v377 = vpow.pop %v376
    %v378 = vadd.f32 %v377, 1.0
    %v379 = vrcp.pop %v378
    %v380 = vmul.f32 1.0, %v379
    %v381 = vpack.c.bf16 %v380, %v380
    %382 = vst [vmem:[%s7] sm:$0xf] %v381
    // Predicated region
    $region46: #{dlrm_mlp_forward.1} parent=1 // pred_check
      _
    $region47: #{dlrm_mlp_forward.1} parent=1 // pred_check_branch
      %384 = sbr.rel (0) target = $region49
    $region48: #{dlrm_mlp_forward.1} parent=1 // pred_region
      _
    $region49: #{dlrm_mlp_forward.1} parent=1 // pred_fallthru
      _
    // Predicated region
    $region50: #{dlrm_mlp_forward.1} parent=1 // pred_check
      _
    $region51: #{dlrm_mlp_forward.1} parent=1 // pred_check_branch
      %386 = sbr.rel (0) target = $region53
    $region52: #{dlrm_mlp_forward.1} parent=1 // pred_region
      _
    $region53: #{dlrm_mlp_forward.1} parent=1 // pred_fallthru
      _
    %387 = vsyncpa [#allocation3], 1
    %388 = vsyncpa [#allocation5], 1
    %389 = vsyncpa [#allocation8], 1

</llo_original>
